<compile_context>
chip_gen: v6e
topology: v6e:2x2x1
jax: 0.10.0
libtpu: 0.0.40
codegen_flags: <defaults>
</compile_context>

<pallas_src>
import jax
import jax.numpy as jnp
from jax.experimental import pallas as pl
from jax.experimental.pallas import tpu as pltpu

EMBED_DIM = 384
LATENT_DIM = 64
LN_EPS = 1e-5
MAX_TILE_B = 256  # rows per grid step (multiple of 8); weights amortize across the tile


def _round_up(n, m):
    return ((n + m - 1) // m) * m


def _linear(h, w_ref, b_ref):
    return jnp.dot(h, w_ref[...], preferred_element_type=jnp.float32) + b_ref[...]


def _layernorm(h, g_ref, b_ref):
    mu = jnp.mean(h, axis=-1, keepdims=True)
    var = jnp.mean((h - mu) ** 2, axis=-1, keepdims=True)
    return (h - mu) * jax.lax.rsqrt(var + LN_EPS) * g_ref[...] + b_ref[...]


def _gelu_exact(h):
    # PyTorch F.gelu default = exact erf formulation.
    return 0.5 * h * (1.0 + jax.lax.erf(h * 0.7071067811865476))


def dpad_kernel(
    x_ref,
    # fused entry projection [input_proj | residual_proj]
    w_ent_ref, b_ent_ref,            # (384, 128), (1, 128)
    # behavior path hidden residual blocks
    w_h1_ref, b_h1_ref,              # (64, 64), (1, 64)
    w_h2_ref, b_h2_ref,
    # fused v_proj @ out_proj @ behavior_head, pre-scaled by softmax(path_weights)[0]
    w_beh_ref, b_beh_ref,            # (64, 64), (1, 64)
    # residual path
    g_r_ref, be_r_ref,               # LayerNorm gamma/beta (1, 64)
    w_res_ref, b_res_ref,            # residual_head pre-scaled by softmax(path_weights)[1]
    # combine
    g_o_ref, be_o_ref,               # output LayerNorm gamma/beta (1, 64)
    w_out_ref, b_out_ref,            # (64, 384), (1, 384)
    # output
    out_ref,
):
    x = x_ref[...]  # (TILE_B, 384) fp32

    # single wide entry matmul for both paths
    y = jnp.dot(x, w_ent_ref[...], preferred_element_type=jnp.float32) + b_ent_ref[...]
    hb = y[:, :LATENT_DIM]            # behavior path latent
    hr = y[:, LATENT_DIM:]            # residual path latent

    # ---- behavior prediction path ----
    hb = hb + _gelu_exact(_linear(hb, w_h1_ref, b_h1_ref))   # residual block 1
    hb = hb + _gelu_exact(_linear(hb, w_h2_ref, b_h2_ref))   # residual block 2
    # AttentionGate with seq_len == 1: softmax over one key == 1, so the gate is
    # exactly out_proj(v_proj(hb)); that chain + behavior_head is pre-fused into
    # one 64x64 matmul (with path weight 0 folded in).
    behavior = _linear(hb, w_beh_ref, b_beh_ref)

    # ---- residual prediction path ----
    hr = _layernorm(hr, g_r_ref, be_r_ref)
    hr = jnp.maximum(hr, 0.0)                                 # ReLU
    residual = _linear(hr, w_res_ref, b_res_ref)              # path weight 1 folded in

    # ---- combine paths ----
    combined = _layernorm(behavior + residual, g_o_ref, be_o_ref)
    out_ref[...] = _linear(combined, w_out_ref, b_out_ref)    # (TILE_B, 384)


# ---------------------------------------------------------------------------
# Parameters
# ---------------------------------------------------------------------------

def init_params(key):
    """Deterministic raw-parameter init matching the module's shapes."""
    def lin(k, din, dout, scale=0.02):
        kw, kb = jax.random.split(k)
        w = jax.random.normal(kw, (din, dout), jnp.float32) * scale
        b = (jax.random.normal(kb, (dout,), jnp.float32) * scale).reshape(1, dout)
        return w, b

    ks = jax.random.split(key, 12)
    p = {}
    p["w_in"], p["b_in"] = lin(ks[0], EMBED_DIM, LATENT_DIM)
    p["w_h1"], p["b_h1"] = lin(ks[1], LATENT_DIM, LATENT_DIM)
    p["w_h2"], p["b_h2"] = lin(ks[2], LATENT_DIM, LATENT_DIM)
    p["w_v"], p["b_v"] = lin(ks[3], LATENT_DIM, LATENT_DIM)
    p["w_o"], p["b_o"] = lin(ks[4], LATENT_DIM, LATENT_DIM)
    p["w_bh"], p["b_bh"] = lin(ks[5], LATENT_DIM, LATENT_DIM)
    p["w_rp"], p["b_rp"] = lin(ks[6], EMBED_DIM, LATENT_DIM)
    p["g_r"] = jnp.ones((1, LATENT_DIM), jnp.float32)
    p["be_r"] = jnp.zeros((1, LATENT_DIM), jnp.float32)
    p["w_rh"], p["b_rh"] = lin(ks[7], LATENT_DIM, LATENT_DIM)
    p["g_o"] = jnp.ones((1, LATENT_DIM), jnp.float32)
    p["be_o"] = jnp.zeros((1, LATENT_DIM), jnp.float32)
    p["w_out"], p["b_out"] = lin(ks[8], LATENT_DIM, EMBED_DIM)
    # nn.Parameter([behavior_weight, residual_weight]) -> softmax applied in forward;
    # static at inference, so precompute.
    p["pw"] = jax.nn.softmax(jnp.array([1.0, 0.5], jnp.float32))
    return p


def fuse_params(p):
    """Exact algebraic fusions done once at wrapper/init time."""
    pw0 = p["pw"][0]
    pw1 = p["pw"][1]
    # [input_proj | residual_proj] -> one (384, 128) weight
    w_ent = jnp.concatenate([p["w_in"], p["w_rp"]], axis=1)
    b_ent = jnp.concatenate([p["b_in"], p["b_rp"]], axis=1)
    # v_proj -> out_proj -> behavior_head (no nonlinearity between) -> one 64x64
    w_attn = p["w_v"] @ p["w_o"] @ p["w_bh"]
    b_attn = (p["b_v"] @ p["w_o"] + p["b_o"]) @ p["w_bh"] + p["b_bh"]
    return {
        "w_ent": w_ent, "b_ent": b_ent,
        "w_h1": p["w_h1"], "b_h1": p["b_h1"],
        "w_h2": p["w_h2"], "b_h2": p["b_h2"],
        "w_beh": pw0 * w_attn, "b_beh": pw0 * b_attn,
        "g_r": p["g_r"], "be_r": p["be_r"],
        "w_res": pw1 * p["w_rh"], "b_res": pw1 * p["b_rh"],
        "g_o": p["g_o"], "be_o": p["be_o"],
        "w_out": p["w_out"], "b_out": p["b_out"],
    }


_FUSED_ORDER = [
    "w_ent", "b_ent", "w_h1", "b_h1", "w_h2", "b_h2", "w_beh", "b_beh",
    "g_r", "be_r", "w_res", "b_res", "g_o", "be_o", "w_out", "b_out",
]


# ---------------------------------------------------------------------------
# Wrapper
# ---------------------------------------------------------------------------

@jax.jit
def dpad_forward(x, fused):
    B, E = x.shape
    assert E == EMBED_DIM

    tile_b = min(MAX_TILE_B, _round_up(B, 8))
    b_pad = _round_up(B, tile_b)
    if b_pad != B:
        x = jnp.pad(x, ((0, b_pad - B), (0, 0)))
    grid = (b_pad // tile_b,)

    io_map = lambda i: (i, 0)
    const_map = lambda i: (0, 0)

    weight_args = [fused[name] for name in _FUSED_ORDER]
    # Weights/biases: full-extent blocks with a constant index_map so Pallas
    # fetches them once and keeps them resident across grid steps.
    weight_specs = [pl.BlockSpec(w.shape, const_map) for w in weight_args]
    weight_bytes = int(sum(w.size * w.dtype.itemsize for w in weight_args))

    cost = pl.CostEstimate(
        flops=2 * b_pad * (EMBED_DIM * 2 * LATENT_DIM          # fused entry matmul
                           + 4 * LATENT_DIM * LATENT_DIM       # h1, h2, fused beh, res head
                           + LATENT_DIM * EMBED_DIM),          # output head
        transcendentals=2 * b_pad * LATENT_DIM,                # two GELUs on (B, 64)
        bytes_accessed=2 * b_pad * EMBED_DIM * 4 + weight_bytes,
    )

    out = pl.pallas_call(
        dpad_kernel,
        out_shape=jax.ShapeDtypeStruct((b_pad, EMBED_DIM), jnp.float32),
        grid=grid,
        in_specs=[pl.BlockSpec((tile_b, EMBED_DIM), io_map)] + weight_specs,
        out_specs=pl.BlockSpec((tile_b, EMBED_DIM), io_map),
        compiler_params=pltpu.CompilerParams(
            dimension_semantics=("parallel",),   # v7x: shard batch tiles across 2 TCs
        ),
        cost_estimate=cost,
    )(x, *weight_args)

    return out[:B] if b_pad != B else out


# ---------------------------------------------------------------------------
# Pure-JAX reference (mirrors the PyTorch forward, eval mode, raw params)
# ---------------------------------------------------------------------------

def dpad_forward_ref(x, p):
    def ln(h, g, b):
        mu = jnp.mean(h, axis=-1, keepdims=True)
        var = jnp.mean((h - mu) ** 2, axis=-1, keepdims=True)
        return (h - mu) / jnp.sqrt(var + LN_EPS) * g + b

    gelu = lambda h: 0.5 * h * (1.0 + jax.lax.erf(h / jnp.sqrt(2.0)))

    hb = x @ p["w_in"] + p["b_in"]
    hb = hb + gelu(hb @ p["w_h1"] + p["b_h1"])
    hb = hb + gelu(hb @ p["w_h2"] + p["b_h2"])
    # AttentionGate, seq_len == 1: softmax over a single key == 1 -> out_proj(v_proj(hb))
    v = hb @ p["w_v"] + p["b_v"]
    hb = v @ p["w_o"] + p["b_o"]
    behavior = hb @ p["w_bh"] + p["b_bh"]

    hr = x @ p["w_rp"] + p["b_rp"]
    hr = jnp.maximum(ln(hr, p["g_r"], p["be_r"]), 0.0)
    residual = hr @ p["w_rh"] + p["b_rh"]

    combined = p["pw"][0] * behavior + p["pw"][1] * residual
    combined = ln(combined, p["g_o"], p["be_o"])
    return combined @ p["w_out"] + p["b_out"]


if __name__ == "__main__":
    key = jax.random.PRNGKey(0)
    kx, kp = jax.random.split(key)
    params = init_params(kp)
    fused = fuse_params(params)

    # small-shape check (single grid step)
    B = 8
    x = jax.random.normal(kx, (B, EMBED_DIM), jnp.float32)
    out = jax.block_until_ready(dpad_forward(x, fused))
    ref = dpad_forward_ref(x, params)
    assert out.shape == (B, EMBED_DIM)
    assert jnp.allclose(out, ref, rtol=1e-4, atol=1e-4), float(jnp.max(jnp.abs(out - ref)))

    # multi-step grid + batch padding check
    B2 = 300
    x2 = jax.random.normal(jax.random.fold_in(kx, 1), (B2, EMBED_DIM), jnp.float32)
    out2 = jax.block_until_ready(dpad_forward(x2, fused))
    ref2 = dpad_forward_ref(x2, params)
    assert out2.shape == (B2, EMBED_DIM)
    assert jnp.allclose(out2, ref2, rtol=1e-4, atol=1e-4), float(jnp.max(jnp.abs(out2 - ref2)))

    print("KERNEL_OK")
</pallas_src>

<mosaic_0001>
module attributes {stable_mosaic.version = 11 : i64} {
  func.func @dpad_kernel(%arg0: i32, %arg1: memref<8x384xf32, #tpu.memory_space<vmem>>, %arg2: memref<384x128xf32, #tpu.memory_space<vmem>>, %arg3: memref<1x128xf32, #tpu.memory_space<vmem>>, %arg4: memref<64x64xf32, #tpu.memory_space<vmem>>, %arg5: memref<1x64xf32, #tpu.memory_space<vmem>>, %arg6: memref<64x64xf32, #tpu.memory_space<vmem>>, %arg7: memref<1x64xf32, #tpu.memory_space<vmem>>, %arg8: memref<64x64xf32, #tpu.memory_space<vmem>>, %arg9: memref<1x64xf32, #tpu.memory_space<vmem>>, %arg10: memref<1x64xf32, #tpu.memory_space<vmem>>, %arg11: memref<1x64xf32, #tpu.memory_space<vmem>>, %arg12: memref<64x64xf32, #tpu.memory_space<vmem>>, %arg13: memref<1x64xf32, #tpu.memory_space<vmem>>, %arg14: memref<1x64xf32, #tpu.memory_space<vmem>>, %arg15: memref<1x64xf32, #tpu.memory_space<vmem>>, %arg16: memref<64x384xf32, #tpu.memory_space<vmem>>, %arg17: memref<1x384xf32, #tpu.memory_space<vmem>>, %arg18: memref<8x384xf32, #tpu.memory_space<vmem>>) attributes {dimension_semantics = [#tpu.dimension_semantics<parallel>], iteration_bounds = array<i64: 1>, scalar_prefetch = 0 : i64, scratch_operands = 0 : i64, tpu.core_type = #tpu.core_type<tc>, window_params = [{transform_indices = @transform_0, window_bounds = array<i64: 8, 384>}, {pipeline_mode = #tpu.pipeline_mode<synchronous>, transform_indices = @transform_1, window_bounds = array<i64: 384, 128>}, {pipeline_mode = #tpu.pipeline_mode<synchronous>, transform_indices = @transform_2, window_bounds = array<i64: 1, 128>}, {pipeline_mode = #tpu.pipeline_mode<synchronous>, transform_indices = @transform_3, window_bounds = array<i64: 64, 64>}, {pipeline_mode = #tpu.pipeline_mode<synchronous>, transform_indices = @transform_4, window_bounds = array<i64: 1, 64>}, {pipeline_mode = #tpu.pipeline_mode<synchronous>, transform_indices = @transform_5, window_bounds = array<i64: 64, 64>}, {pipeline_mode = #tpu.pipeline_mode<synchronous>, transform_indices = @transform_6, window_bounds = array<i64: 1, 64>}, {pipeline_mode = #tpu.pipeline_mode<synchronous>, transform_indices = @transform_7, window_bounds = array<i64: 64, 64>}, {pipeline_mode = #tpu.pipeline_mode<synchronous>, transform_indices = @transform_8, window_bounds = array<i64: 1, 64>}, {pipeline_mode = #tpu.pipeline_mode<synchronous>, transform_indices = @transform_9, window_bounds = array<i64: 1, 64>}, {pipeline_mode = #tpu.pipeline_mode<synchronous>, transform_indices = @transform_10, window_bounds = array<i64: 1, 64>}, {pipeline_mode = #tpu.pipeline_mode<synchronous>, transform_indices = @transform_11, window_bounds = array<i64: 64, 64>}, {pipeline_mode = #tpu.pipeline_mode<synchronous>, transform_indices = @transform_12, window_bounds = array<i64: 1, 64>}, {pipeline_mode = #tpu.pipeline_mode<synchronous>, transform_indices = @transform_13, window_bounds = array<i64: 1, 64>}, {pipeline_mode = #tpu.pipeline_mode<synchronous>, transform_indices = @transform_14, window_bounds = array<i64: 1, 64>}, {pipeline_mode = #tpu.pipeline_mode<synchronous>, transform_indices = @transform_15, window_bounds = array<i64: 64, 384>}, {pipeline_mode = #tpu.pipeline_mode<synchronous>, transform_indices = @transform_16, window_bounds = array<i64: 1, 384>}, {transform_indices = @transform_17, window_bounds = array<i64: 8, 384>}]} {
    %c0 = arith.constant 0 : index
    %c0_0 = arith.constant 0 : index
    %0 = vector.load %arg1[%c0, %c0_0] : memref<8x384xf32, #tpu.memory_space<vmem>>, vector<8x384xf32>
    %c0_1 = arith.constant 0 : index
    %c0_2 = arith.constant 0 : index
    %1 = vector.load %arg2[%c0_1, %c0_2] : memref<384x128xf32, #tpu.memory_space<vmem>>, vector<384x128xf32>
    %cst = arith.constant dense<0.000000e+00> : vector<8x128xf32>
    %2 = tpu.matmul %0, %1, %cst {dimension_numbers = #tpu.dot_dimension_numbers<[1], [0], [0], [1], [0, 0, 1, 1], [], []>} : vector<8x384xf32>, vector<384x128xf32>, vector<8x128xf32> -> vector<8x128xf32>
    %c0_3 = arith.constant 0 : index
    %c0_4 = arith.constant 0 : index
    %3 = vector.load %arg3[%c0_3, %c0_4] : memref<1x128xf32, #tpu.memory_space<vmem>>, vector<1x128xf32>
    %4 = vector.broadcast %3 : vector<1x128xf32> to vector<8x128xf32>
    %5 = arith.addf %2, %4 : vector<8x128xf32>
    %6 = vector.extract_strided_slice %5 {offsets = [0, 0], sizes = [8, 64], strides = [1, 1]} : vector<8x128xf32> to vector<8x64xf32>
    %7 = vector.extract_strided_slice %5 {offsets = [0, 64], sizes = [8, 64], strides = [1, 1]} : vector<8x128xf32> to vector<8x64xf32>
    %c0_5 = arith.constant 0 : index
    %c0_6 = arith.constant 0 : index
    %8 = vector.load %arg4[%c0_5, %c0_6] : memref<64x64xf32, #tpu.memory_space<vmem>>, vector<64x64xf32>
    %cst_7 = arith.constant dense<0.000000e+00> : vector<8x64xf32>
    %9 = tpu.matmul %6, %8, %cst_7 {dimension_numbers = #tpu.dot_dimension_numbers<[1], [0], [0], [1], [0, 0, 1, 1], [], []>} : vector<8x64xf32>, vector<64x64xf32>, vector<8x64xf32> -> vector<8x64xf32>
    %c0_8 = arith.constant 0 : index
    %c0_9 = arith.constant 0 : index
    %10 = vector.load %arg5[%c0_8, %c0_9] : memref<1x64xf32, #tpu.memory_space<vmem>>, vector<1x64xf32>
    %11 = vector.broadcast %10 : vector<1x64xf32> to vector<8x64xf32>
    %12 = arith.addf %9, %11 : vector<8x64xf32>
    %cst_10 = arith.constant 5.000000e-01 : f32
    %13 = vector.broadcast %cst_10 : f32 to vector<8x64xf32>
    %14 = arith.mulf %13, %12 : vector<8x64xf32>
    %cst_11 = arith.constant 0.707106769 : f32
    %15 = vector.broadcast %cst_11 : f32 to vector<8x64xf32>
    %16 = arith.mulf %12, %15 : vector<8x64xf32>
    %17 = math.erf %16 : vector<8x64xf32>
    %cst_12 = arith.constant 1.000000e+00 : f32
    %18 = vector.broadcast %cst_12 : f32 to vector<8x64xf32>
    %19 = arith.addf %18, %17 : vector<8x64xf32>
    %20 = arith.mulf %14, %19 : vector<8x64xf32>
    %21 = arith.addf %6, %20 : vector<8x64xf32>
    %c0_13 = arith.constant 0 : index
    %c0_14 = arith.constant 0 : index
    %22 = vector.load %arg6[%c0_13, %c0_14] : memref<64x64xf32, #tpu.memory_space<vmem>>, vector<64x64xf32>
    %cst_15 = arith.constant dense<0.000000e+00> : vector<8x64xf32>
    %23 = tpu.matmul %21, %22, %cst_15 {dimension_numbers = #tpu.dot_dimension_numbers<[1], [0], [0], [1], [0, 0, 1, 1], [], []>} : vector<8x64xf32>, vector<64x64xf32>, vector<8x64xf32> -> vector<8x64xf32>
    %c0_16 = arith.constant 0 : index
    %c0_17 = arith.constant 0 : index
    %24 = vector.load %arg7[%c0_16, %c0_17] : memref<1x64xf32, #tpu.memory_space<vmem>>, vector<1x64xf32>
    %25 = vector.broadcast %24 : vector<1x64xf32> to vector<8x64xf32>
    %26 = arith.addf %23, %25 : vector<8x64xf32>
    %cst_18 = arith.constant 5.000000e-01 : f32
    %27 = vector.broadcast %cst_18 : f32 to vector<8x64xf32>
    %28 = arith.mulf %27, %26 : vector<8x64xf32>
    %cst_19 = arith.constant 0.707106769 : f32
    %29 = vector.broadcast %cst_19 : f32 to vector<8x64xf32>
    %30 = arith.mulf %26, %29 : vector<8x64xf32>
    %31 = math.erf %30 : vector<8x64xf32>
    %cst_20 = arith.constant 1.000000e+00 : f32
    %32 = vector.broadcast %cst_20 : f32 to vector<8x64xf32>
    %33 = arith.addf %32, %31 : vector<8x64xf32>
    %34 = arith.mulf %28, %33 : vector<8x64xf32>
    %35 = arith.addf %21, %34 : vector<8x64xf32>
    %c0_21 = arith.constant 0 : index
    %c0_22 = arith.constant 0 : index
    %36 = vector.load %arg8[%c0_21, %c0_22] : memref<64x64xf32, #tpu.memory_space<vmem>>, vector<64x64xf32>
    %cst_23 = arith.constant dense<0.000000e+00> : vector<8x64xf32>
    %37 = tpu.matmul %35, %36, %cst_23 {dimension_numbers = #tpu.dot_dimension_numbers<[1], [0], [0], [1], [0, 0, 1, 1], [], []>} : vector<8x64xf32>, vector<64x64xf32>, vector<8x64xf32> -> vector<8x64xf32>
    %c0_24 = arith.constant 0 : index
    %c0_25 = arith.constant 0 : index
    %38 = vector.load %arg9[%c0_24, %c0_25] : memref<1x64xf32, #tpu.memory_space<vmem>>, vector<1x64xf32>
    %39 = vector.broadcast %38 : vector<1x64xf32> to vector<8x64xf32>
    %40 = arith.addf %37, %39 : vector<8x64xf32>
    %cst_26 = arith.constant dense<0.000000e+00> : vector<8xf32>
    %41 = vector.multi_reduction <add>, %7, %cst_26 [1] : vector<8x64xf32> to vector<8xf32>
    %42 = vector.shape_cast %41 : vector<8xf32> to vector<8x1xf32>
    %cst_27 = arith.constant 6.400000e+01 : f32
    %43 = vector.broadcast %cst_27 : f32 to vector<8x1xf32>
    %44 = arith.divf %42, %43 : vector<8x1xf32>
    %45 = vector.broadcast %44 : vector<8x1xf32> to vector<8x64xf32>
    %46 = arith.subf %7, %45 : vector<8x64xf32>
    %47 = arith.mulf %46, %46 : vector<8x64xf32>
    %cst_28 = arith.constant dense<0.000000e+00> : vector<8xf32>
    %48 = vector.multi_reduction <add>, %47, %cst_28 [1] : vector<8x64xf32> to vector<8xf32>
    %49 = vector.shape_cast %48 : vector<8xf32> to vector<8x1xf32>
    %cst_29 = arith.constant 6.400000e+01 : f32
    %50 = vector.broadcast %cst_29 : f32 to vector<8x1xf32>
    %51 = arith.divf %49, %50 : vector<8x1xf32>
    %52 = vector.broadcast %44 : vector<8x1xf32> to vector<8x64xf32>
    %53 = arith.subf %7, %52 : vector<8x64xf32>
    %cst_30 = arith.constant 9.99999974E-6 : f32
    %54 = vector.broadcast %cst_30 : f32 to vector<8x1xf32>
    %55 = arith.addf %51, %54 : vector<8x1xf32>
    %56 = math.rsqrt %55 : vector<8x1xf32>
    %57 = vector.broadcast %56 : vector<8x1xf32> to vector<8x64xf32>
    %58 = arith.mulf %53, %57 : vector<8x64xf32>
    %c0_31 = arith.constant 0 : index
    %c0_32 = arith.constant 0 : index
    %59 = vector.load %arg10[%c0_31, %c0_32] : memref<1x64xf32, #tpu.memory_space<vmem>>, vector<1x64xf32>
    %60 = vector.broadcast %59 : vector<1x64xf32> to vector<8x64xf32>
    %61 = arith.mulf %58, %60 : vector<8x64xf32>
    %c0_33 = arith.constant 0 : index
    %c0_34 = arith.constant 0 : index
    %62 = vector.load %arg11[%c0_33, %c0_34] : memref<1x64xf32, #tpu.memory_space<vmem>>, vector<1x64xf32>
    %63 = vector.broadcast %62 : vector<1x64xf32> to vector<8x64xf32>
    %64 = arith.addf %61, %63 : vector<8x64xf32>
    %cst_35 = arith.constant 0.000000e+00 : f32
    %65 = vector.broadcast %cst_35 : f32 to vector<8x64xf32>
    %66 = arith.maximumf %64, %65 : vector<8x64xf32>
    %c0_36 = arith.constant 0 : index
    %c0_37 = arith.constant 0 : index
    %67 = vector.load %arg12[%c0_36, %c0_37] : memref<64x64xf32, #tpu.memory_space<vmem>>, vector<64x64xf32>
    %cst_38 = arith.constant dense<0.000000e+00> : vector<8x64xf32>
    %68 = tpu.matmul %66, %67, %cst_38 {dimension_numbers = #tpu.dot_dimension_numbers<[1], [0], [0], [1], [0, 0, 1, 1], [], []>} : vector<8x64xf32>, vector<64x64xf32>, vector<8x64xf32> -> vector<8x64xf32>
    %c0_39 = arith.constant 0 : index
    %c0_40 = arith.constant 0 : index
    %69 = vector.load %arg13[%c0_39, %c0_40] : memref<1x64xf32, #tpu.memory_space<vmem>>, vector<1x64xf32>
    %70 = vector.broadcast %69 : vector<1x64xf32> to vector<8x64xf32>
    %71 = arith.addf %68, %70 : vector<8x64xf32>
    %72 = arith.addf %40, %71 : vector<8x64xf32>
    %cst_41 = arith.constant dense<0.000000e+00> : vector<8xf32>
    %73 = vector.multi_reduction <add>, %72, %cst_41 [1] : vector<8x64xf32> to vector<8xf32>
    %74 = vector.shape_cast %73 : vector<8xf32> to vector<8x1xf32>
    %cst_42 = arith.constant 6.400000e+01 : f32
    %75 = vector.broadcast %cst_42 : f32 to vector<8x1xf32>
    %76 = arith.divf %74, %75 : vector<8x1xf32>
    %77 = vector.broadcast %76 : vector<8x1xf32> to vector<8x64xf32>
    %78 = arith.subf %72, %77 : vector<8x64xf32>
    %79 = arith.mulf %78, %78 : vector<8x64xf32>
    %cst_43 = arith.constant dense<0.000000e+00> : vector<8xf32>
    %80 = vector.multi_reduction <add>, %79, %cst_43 [1] : vector<8x64xf32> to vector<8xf32>
    %81 = vector.shape_cast %80 : vector<8xf32> to vector<8x1xf32>
    %cst_44 = arith.constant 6.400000e+01 : f32
    %82 = vector.broadcast %cst_44 : f32 to vector<8x1xf32>
    %83 = arith.divf %81, %82 : vector<8x1xf32>
    %84 = vector.broadcast %76 : vector<8x1xf32> to vector<8x64xf32>
    %85 = arith.subf %72, %84 : vector<8x64xf32>
    %cst_45 = arith.constant 9.99999974E-6 : f32
    %86 = vector.broadcast %cst_45 : f32 to vector<8x1xf32>
    %87 = arith.addf %83, %86 : vector<8x1xf32>
    %88 = math.rsqrt %87 : vector<8x1xf32>
    %89 = vector.broadcast %88 : vector<8x1xf32> to vector<8x64xf32>
    %90 = arith.mulf %85, %89 : vector<8x64xf32>
    %c0_46 = arith.constant 0 : index
    %c0_47 = arith.constant 0 : index
    %91 = vector.load %arg14[%c0_46, %c0_47] : memref<1x64xf32, #tpu.memory_space<vmem>>, vector<1x64xf32>
    %92 = vector.broadcast %91 : vector<1x64xf32> to vector<8x64xf32>
    %93 = arith.mulf %90, %92 : vector<8x64xf32>
    %c0_48 = arith.constant 0 : index
    %c0_49 = arith.constant 0 : index
    %94 = vector.load %arg15[%c0_48, %c0_49] : memref<1x64xf32, #tpu.memory_space<vmem>>, vector<1x64xf32>
    %95 = vector.broadcast %94 : vector<1x64xf32> to vector<8x64xf32>
    %96 = arith.addf %93, %95 : vector<8x64xf32>
    %c0_50 = arith.constant 0 : index
    %c0_51 = arith.constant 0 : index
    %97 = vector.load %arg16[%c0_50, %c0_51] : memref<64x384xf32, #tpu.memory_space<vmem>>, vector<64x384xf32>
    %cst_52 = arith.constant dense<0.000000e+00> : vector<8x384xf32>
    %98 = tpu.matmul %96, %97, %cst_52 {dimension_numbers = #tpu.dot_dimension_numbers<[1], [0], [0], [1], [0, 0, 1, 1], [], []>} : vector<8x64xf32>, vector<64x384xf32>, vector<8x384xf32> -> vector<8x384xf32>
    %c0_53 = arith.constant 0 : index
    %c0_54 = arith.constant 0 : index
    %99 = vector.load %arg17[%c0_53, %c0_54] : memref<1x384xf32, #tpu.memory_space<vmem>>, vector<1x384xf32>
    %100 = vector.broadcast %99 : vector<1x384xf32> to vector<8x384xf32>
    %101 = arith.addf %98, %100 : vector<8x384xf32>
    %c0_55 = arith.constant 0 : index
    %c0_56 = arith.constant 0 : index
    %102 = vector.load %arg18[%c0_55, %c0_56] : memref<8x384xf32, #tpu.memory_space<vmem>>, vector<8x384xf32>
    tpu.vector_store %arg18[%c0_55, %c0_56], %101 {strides = array<i32>} : memref<8x384xf32, #tpu.memory_space<vmem>>, vector<8x384xf32>,
    return
  }
  func.func @transform_0(%arg0: i32) -> (i32, i32) {
    %c0_i32 = arith.constant 0 : i32
    %c0_i32_0 = arith.constant 0 : i32
    return %arg0, %c0_i32 : i32, i32
  }
  func.func @transform_1(%arg0: i32) -> (i32, i32) {
    %c0_i32 = arith.constant 0 : i32
    %c0_i32_0 = arith.constant 0 : i32
    %c0_i32_1 = arith.constant 0 : i32
    return %c0_i32, %c0_i32_0 : i32, i32
  }
  func.func @transform_2(%arg0: i32) -> (i32, i32) {
    %c0_i32 = arith.constant 0 : i32
    %c0_i32_0 = arith.constant 0 : i32
    %c0_i32_1 = arith.constant 0 : i32
    return %c0_i32, %c0_i32_0 : i32, i32
  }
  func.func @transform_3(%arg0: i32) -> (i32, i32) {
    %c0_i32 = arith.constant 0 : i32
    %c0_i32_0 = arith.constant 0 : i32
    %c0_i32_1 = arith.constant 0 : i32
    return %c0_i32, %c0_i32_0 : i32, i32
  }
  func.func @transform_4(%arg0: i32) -> (i32, i32) {
    %c0_i32 = arith.constant 0 : i32
    %c0_i32_0 = arith.constant 0 : i32
    %c0_i32_1 = arith.constant 0 : i32
    return %c0_i32, %c0_i32_0 : i32, i32
  }
  func.func @transform_5(%arg0: i32) -> (i32, i32) {
    %c0_i32 = arith.constant 0 : i32
    %c0_i32_0 = arith.constant 0 : i32
    %c0_i32_1 = arith.constant 0 : i32
    return %c0_i32, %c0_i32_0 : i32, i32
  }
  func.func @transform_6(%arg0: i32) -> (i32, i32) {
    %c0_i32 = arith.constant 0 : i32
    %c0_i32_0 = arith.constant 0 : i32
    %c0_i32_1 = arith.constant 0 : i32
    return %c0_i32, %c0_i32_0 : i32, i32
  }
  func.func @transform_7(%arg0: i32) -> (i32, i32) {
    %c0_i32 = arith.constant 0 : i32
    %c0_i32_0 = arith.constant 0 : i32
    %c0_i32_1 = arith.constant 0 : i32
    return %c0_i32, %c0_i32_0 : i32, i32
  }
  func.func @transform_8(%arg0: i32) -> (i32, i32) {
    %c0_i32 = arith.constant 0 : i32
    %c0_i32_0 = arith.constant 0 : i32
    %c0_i32_1 = arith.constant 0 : i32
    return %c0_i32, %c0_i32_0 : i32, i32
  }
  func.func @transform_9(%arg0: i32) -> (i32, i32) {
    %c0_i32 = arith.constant 0 : i32
    %c0_i32_0 = arith.constant 0 : i32
    %c0_i32_1 = arith.constant 0 : i32
    return %c0_i32, %c0_i32_0 : i32, i32
  }
  func.func @transform_10(%arg0: i32) -> (i32, i32) {
    %c0_i32 = arith.constant 0 : i32
    %c0_i32_0 = arith.constant 0 : i32
    %c0_i32_1 = arith.constant 0 : i32
    return %c0_i32, %c0_i32_0 : i32, i32
  }
  func.func @transform_11(%arg0: i32) -> (i32, i32) {
    %c0_i32 = arith.constant 0 : i32
    %c0_i32_0 = arith.constant 0 : i32
    %c0_i32_1 = arith.constant 0 : i32
    return %c0_i32, %c0_i32_0 : i32, i32
  }
  func.func @transform_12(%arg0: i32) -> (i32, i32) {
    %c0_i32 = arith.constant 0 : i32
    %c0_i32_0 = arith.constant 0 : i32
    %c0_i32_1 = arith.constant 0 : i32
    return %c0_i32, %c0_i32_0 : i32, i32
  }
  func.func @transform_13(%arg0: i32) -> (i32, i32) {
    %c0_i32 = arith.constant 0 : i32
    %c0_i32_0 = arith.constant 0 : i32
    %c0_i32_1 = arith.constant 0 : i32
    return %c0_i32, %c0_i32_0 : i32, i32
  }
  func.func @transform_14(%arg0: i32) -> (i32, i32) {
    %c0_i32 = arith.constant 0 : i32
    %c0_i32_0 = arith.constant 0 : i32
    %c0_i32_1 = arith.constant 0 : i32
    return %c0_i32, %c0_i32_0 : i32, i32
  }
  func.func @transform_15(%arg0: i32) -> (i32, i32) {
    %c0_i32 = arith.constant 0 : i32
    %c0_i32_0 = arith.constant 0 : i32
    %c0_i32_1 = arith.constant 0 : i32
    return %c0_i32, %c0_i32_0 : i32, i32
  }
  func.func @transform_16(%arg0: i32) -> (i32, i32) {
    %c0_i32 = arith.constant 0 : i32
    %c0_i32_0 = arith.constant 0 : i32
    %c0_i32_1 = arith.constant 0 : i32
    return %c0_i32, %c0_i32_0 : i32, i32
  }
  func.func @transform_17(%arg0: i32) -> (i32, i32) {
    %c0_i32 = arith.constant 0 : i32
    %c0_i32_0 = arith.constant 0 : i32
    return %arg0, %c0_i32 : i32, i32
  }
}

</mosaic_0001>

<llo_original>
// kernel: dpad_forward.1
$region0: #{dpad_forward.1}
  #allocation0 [shape = 'u32[]', space=smem, size = 0x4, offset = 0x4, fixed_abs, tag = 'smem constant byte address 0x4 - core index']
  #allocation1 [shape = 'u32[144,128]{1,0:T(1,128)}', space=vmem, size = 0x12000, scoped, tag = 'internal scratch']
  %s0 = inlined_call_operand.hbm [shape: f32[8,384], index: 0, kind: input, shape index: {}]
  %s1 = inlined_call_operand.hbm [shape: f32[384,128], index: 1, kind: input, shape index: {}]
  %s2 = inlined_call_operand.vmem [shape: f32[1,128], index: 2, kind: input, shape index: {}]
  %s3 = inlined_call_operand.hbm [shape: f32[64,64], index: 3, kind: input, shape index: {}]
  %s4 = inlined_call_operand.vmem [shape: f32[1,64], index: 4, kind: input, shape index: {}]
  %s5 = inlined_call_operand.hbm [shape: f32[64,64], index: 5, kind: input, shape index: {}]
  %s6 = inlined_call_operand.vmem [shape: f32[1,64], index: 6, kind: input, shape index: {}]
  %s7 = inlined_call_operand.hbm [shape: f32[64,64], index: 7, kind: input, shape index: {}]
  %s8 = inlined_call_operand.hbm [shape: f32[1,64], index: 8, kind: input, shape index: {}]
  %s9 = inlined_call_operand.vmem [shape: f32[1,64], index: 9, kind: input, shape index: {}]
  %s10 = inlined_call_operand.vmem [shape: f32[1,64], index: 10, kind: input, shape index: {}]
  %s11 = inlined_call_operand.hbm [shape: f32[64,64], index: 11, kind: input, shape index: {}]
  %s12 = inlined_call_operand.vmem [shape: f32[1,64], index: 12, kind: input, shape index: {}]
  %s13 = inlined_call_operand.vmem [shape: f32[1,64], index: 13, kind: input, shape index: {}]
  %s14 = inlined_call_operand.vmem [shape: f32[1,64], index: 14, kind: input, shape index: {}]
  %s15 = inlined_call_operand.hbm [shape: f32[64,384], index: 15, kind: input, shape index: {}]
  %s16 = inlined_call_operand.vmem [shape: f32[1,384], index: 16, kind: input, shape index: {}]
  %s17 = inlined_call_operand.hbm [shape: f32[8,384], index: 17, kind: output, shape index: {}]
  %s18 = sld [smem:[#allocation0]]
  $region110: #{dpad_forward.1} parent=0
    _
  %s20 = ssub.s32 1, %s18
  %s21 = scalar_select 0, %s20, %s18
  $region1: #{dpad_forward.1} parent=0
    #allocation2 [shape = 'u8[12288]{0}', space=vmem, size = 0x3000, scoped, tag = 'input window, operand 0, single buffered']
    #allocation3 [shape = 's32[1]{0}', space=sflag, size = 0x4, scoped, tag = 'scoped memory for dpad_forward.1']
    #allocation4 [shape = 's32[1]{0}', space=sflag, size = 0x4, scoped, tag = 'scoped memory for dpad_forward.1']
    #allocation5 [shape = 'u8[196608]{0}', space=vmem, size = 0x30000, scoped, tag = 'input window, operand 1, single buffered']
    #allocation6 [shape = 's32[1]{0}', space=sflag, size = 0x4, scoped, tag = 'scoped memory for dpad_forward.1']
    #allocation7 [shape = 'u8[32768]{0}', space=vmem, size = 0x8000, scoped, tag = 'input window, operand 3, single buffered']
    #allocation8 [shape = 'u8[32768]{0}', space=vmem, size = 0x8000, scoped, tag = 'input window, operand 5, single buffered']
    #allocation9 [shape = 's32[1]{0}', space=sflag, size = 0x4, scoped, tag = 'scoped memory for dpad_forward.1']
    #allocation10 [shape = 'u8[32768]{0}', space=vmem, size = 0x8000, scoped, tag = 'input window, operand 7, single buffered']
    #allocation11 [shape = 'u8[512]{0}', space=vmem, size = 0x400, scoped, tag = 'input window, operand 8, single buffered']
    #allocation12 [shape = 's32[1]{0}', space=sflag, size = 0x4, scoped, tag = 'scoped memory for dpad_forward.1']
    #allocation13 [shape = 'u8[32768]{0}', space=vmem, size = 0x8000, scoped, tag = 'input window, operand 11, single buffered']
    #allocation14 [shape = 'u8[98304]{0}', space=vmem, size = 0x18000, scoped, tag = 'input window, operand 15, single buffered']
    #allocation15 [shape = 's32[1]{0}', space=sflag, size = 0x4, scoped, tag = 'scoped memory for dpad_forward.1']
    #allocation16 [shape = 'u8[12288]{0}', space=vmem, size = 0x3000, scoped, tag = 'output window, operand 0, single buffered']
    %22 = vsyncpa [#allocation3], 0
    %23 = vsyncpa [#allocation6], 0
    %24 = vsyncpa [#allocation9], 0
    %25 = vsyncpa [#allocation12], 0
    %26 = vsyncpa [#allocation15], 0
    %27 = vsyncpa [#allocation4], 0
    // Predicated region
    $region2: #{dpad_forward.1} parent=1 // pred_check
      _
    $region3: #{dpad_forward.1} parent=1 // pred_check_branch
      %29 = sbr.rel (0) target = $region5
    $region4: #{dpad_forward.1} parent=1 // pred_region
      %s31 = ssub.s32 384, 384
      %32 = vsyncadd [#allocation3], %s31
      %s34 = sshll.u32 [#allocation2], 4
      %s35 = int_to_ptr.vmem [resolvable:$true] %s34
      %37 = dma.hbm_to_vmem [thread:$0]  %s0, 384, %s35, [#allocation3]
    $region5: #{dpad_forward.1} parent=1 // pred_fallthru
      _
    // Predicated region
    $region6: #{dpad_forward.1} parent=1 // pred_check
      _
    $region7: #{dpad_forward.1} parent=1 // pred_check_branch
      %39 = sbr.rel (0) target = $region9
    $region8: #{dpad_forward.1} parent=1 // pred_region
      %s41 = ssub.s32 6144, 6144
      %42 = vsyncadd [#allocation6], %s41
      %s43 = sshll.u32 [#allocation5], 4
      %s44 = int_to_ptr.vmem [resolvable:$true] %s43
      %49 = dma.hbm_to_vmem [thread:$0]  %s1, 6144, %s44, [#allocation6], 128, 128, 8
    $region9: #{dpad_forward.1} parent=1 // pred_fallthru
      _
    // Predicated region
    $region10: #{dpad_forward.1} parent=1 // pred_check
      _
    $region11: #{dpad_forward.1} parent=1 // pred_check_branch
      %51 = sbr.rel (0) target = $region13
    $region12: #{dpad_forward.1} parent=1 // pred_region
      _
    $region13: #{dpad_forward.1} parent=1 // pred_fallthru
      _
    // Predicated region
    $region14: #{dpad_forward.1} parent=1 // pred_check
      _
    $region15: #{dpad_forward.1} parent=1 // pred_check_branch
      %53 = sbr.rel (0) target = $region17
    $region16: #{dpad_forward.1} parent=1 // pred_region
      %s55 = ssub.s32 1024, 1024
      %56 = vsyncadd [#allocation6], %s55
      %s57 = sshll.u32 [#allocation7], 4
      %s58 = int_to_ptr.vmem [resolvable:$true] %s57
      %63 = dma.hbm_to_vmem [thread:$0]  %s3, 1024, %s58, [#allocation6], 128, 128, 8
    $region17: #{dpad_forward.1} parent=1 // pred_fallthru
      _
    // Predicated region
    $region18: #{dpad_forward.1} parent=1 // pred_check
      _
    $region19: #{dpad_forward.1} parent=1 // pred_check_branch
      %65 = sbr.rel (0) target = $region21
    $region20: #{dpad_forward.1} parent=1 // pred_region
      _
    $region21: #{dpad_forward.1} parent=1 // pred_fallthru
      _
    // Predicated region
    $region22: #{dpad_forward.1} parent=1 // pred_check
      _
    $region23: #{dpad_forward.1} parent=1 // pred_check_branch
      %67 = sbr.rel (0) target = $region25
    $region24: #{dpad_forward.1} parent=1 // pred_region
      %s69 = ssub.s32 1024, 1024
      %70 = vsyncadd [#allocation9], %s69
      %s71 = sshll.u32 [#allocation8], 4
      %s72 = int_to_ptr.vmem [resolvable:$true] %s71
      %77 = dma.hbm_to_vmem [thread:$0]  %s5, 1024, %s72, [#allocation9], 128, 128, 8
    $region25: #{dpad_forward.1} parent=1 // pred_fallthru
      _
    // Predicated region
    $region26: #{dpad_forward.1} parent=1 // pred_check
      _
    $region27: #{dpad_forward.1} parent=1 // pred_check_branch
      %79 = sbr.rel (0) target = $region29
    $region28: #{dpad_forward.1} parent=1 // pred_region
      _
    $region29: #{dpad_forward.1} parent=1 // pred_fallthru
      _
    // Predicated region
    $region30: #{dpad_forward.1} parent=1 // pred_check
      _
    $region31: #{dpad_forward.1} parent=1 // pred_check_branch
      %81 = sbr.rel (0) target = $region33
    $region32: #{dpad_forward.1} parent=1 // pred_region
      %s83 = ssub.s32 1024, 1024
      %84 = vsyncadd [#allocation9], %s83
      %s85 = sshll.u32 [#allocation10], 4
      %s86 = int_to_ptr.vmem [resolvable:$true] %s85
      %91 = dma.hbm_to_vmem [thread:$0]  %s7, 1024, %s86, [#allocation9], 128, 128, 8
    $region33: #{dpad_forward.1} parent=1 // pred_fallthru
      _
    // Predicated region
    $region34: #{dpad_forward.1} parent=1 // pred_check
      _
    $region35: #{dpad_forward.1} parent=1 // pred_check_branch
      %93 = sbr.rel (0) target = $region37
    $region36: #{dpad_forward.1} parent=1 // pred_region
      %s95 = ssub.s32 16, 16
      %96 = vsyncadd [#allocation12], %s95
      %s98 = sshll.u32 [#allocation11], 4
      %s99 = int_to_ptr.vmem [resolvable:$true] %s98
      %101 = dma.hbm_to_vmem [thread:$0]  %s8, 16, %s99, [#allocation12]
    $region37: #{dpad_forward.1} parent=1 // pred_fallthru
      _
    // Predicated region
    $region38: #{dpad_forward.1} parent=1 // pred_check
      _
    $region39: #{dpad_forward.1} parent=1 // pred_check_branch
      %103 = sbr.rel (0) target = $region41
    $region40: #{dpad_forward.1} parent=1 // pred_region
      _
    $region41: #{dpad_forward.1} parent=1 // pred_fallthru
      _
    // Predicated region
    $region42: #{dpad_forward.1} parent=1 // pred_check
      _
    $region43: #{dpad_forward.1} parent=1 // pred_check_branch
      %105 = sbr.rel (0) target = $region45
    $region44: #{dpad_forward.1} parent=1 // pred_region
      _
    $region45: #{dpad_forward.1} parent=1 // pred_fallthru
      _
    // Predicated region
    $region46: #{dpad_forward.1} parent=1 // pred_check
      _
    $region47: #{dpad_forward.1} parent=1 // pred_check_branch
      %107 = sbr.rel (0) target = $region49
    $region48: #{dpad_forward.1} parent=1 // pred_region
      %s109 = ssub.s32 1024, 1024
      %110 = vsyncadd [#allocation12], %s109
      %s111 = sshll.u32 [#allocation13], 4
      %s112 = int_to_ptr.vmem [resolvable:$true] %s111
      %117 = dma.hbm_to_vmem [thread:$0]  %s11, 1024, %s112, [#allocation12], 128, 128, 8
    $region49: #{dpad_forward.1} parent=1 // pred_fallthru
      _
    // Predicated region
    $region50: #{dpad_forward.1} parent=1 // pred_check
      _
    $region51: #{dpad_forward.1} parent=1 // pred_check_branch
      %119 = sbr.rel (0) target = $region53
    $region52: #{dpad_forward.1} parent=1 // pred_region
      _
    $region53: #{dpad_forward.1} parent=1 // pred_fallthru
      _
    // Predicated region
    $region54: #{dpad_forward.1} parent=1 // pred_check
      _
    $region55: #{dpad_forward.1} parent=1 // pred_check_branch
      %121 = sbr.rel (0) target = $region57
    $region56: #{dpad_forward.1} parent=1 // pred_region
      _
    $region57: #{dpad_forward.1} parent=1 // pred_fallthru
      _
    // Predicated region
    $region58: #{dpad_forward.1} parent=1 // pred_check
      _
    $region59: #{dpad_forward.1} parent=1 // pred_check_branch
      %123 = sbr.rel (0) target = $region61
    $region60: #{dpad_forward.1} parent=1 // pred_region
      _
    $region61: #{dpad_forward.1} parent=1 // pred_fallthru
      _
    // Predicated region
    $region62: #{dpad_forward.1} parent=1 // pred_check
      _
    $region63: #{dpad_forward.1} parent=1 // pred_check_branch
      %125 = sbr.rel (0) target = $region65
    $region64: #{dpad_forward.1} parent=1 // pred_region
      %s127 = ssub.s32 3072, 3072
      %128 = vsyncadd [#allocation15], %s127
      %s129 = sshll.u32 [#allocation14], 4
      %s130 = int_to_ptr.vmem [resolvable:$true] %s129
      %135 = dma.hbm_to_vmem [thread:$0]  %s15, 3072, %s130, [#allocation15], 384, 384, 24
    $region65: #{dpad_forward.1} parent=1 // pred_fallthru
      _
    // Predicated region
    $region66: #{dpad_forward.1} parent=1 // pred_check
      _
    $region67: #{dpad_forward.1} parent=1 // pred_check_branch
      %137 = sbr.rel (0) target = $region69
    $region68: #{dpad_forward.1} parent=1 // pred_region
      _
    $region69: #{dpad_forward.1} parent=1 // pred_fallthru
      _
    // Predicated region
    $region70: #{dpad_forward.1} parent=1 // pred_check
      _
    $region71: #{dpad_forward.1} parent=1 // pred_check_branch
      %139 = sbr.rel (0) target = $region73
    $region72: #{dpad_forward.1} parent=1 // pred_region
      %140 = dma.done [#allocation3], 384
    $region73: #{dpad_forward.1} parent=1 // pred_fallthru
      _
    // Predicated region
    $region74: #{dpad_forward.1} parent=1 // pred_check
      _
    $region75: #{dpad_forward.1} parent=1 // pred_check_branch
      %142 = sbr.rel (0) target = $region77
    $region76: #{dpad_forward.1} parent=1 // pred_region
      %143 = dma.done [#allocation6], 6144
    $region77: #{dpad_forward.1} parent=1 // pred_fallthru
      _
    // Predicated region
    $region78: #{dpad_forward.1} parent=1 // pred_check
      _
    $region79: #{dpad_forward.1} parent=1 // pred_check_branch
      %145 = sbr.rel (0) target = $region81
    $region80: #{dpad_forward.1} parent=1 // pred_region
      %146 = dma.done [#allocation6], 1024
    $region81: #{dpad_forward.1} parent=1 // pred_fallthru
      _
    // Predicated region
    $region82: #{dpad_forward.1} parent=1 // pred_check
      _
    $region83: #{dpad_forward.1} parent=1 // pred_check_branch
      %148 = sbr.rel (0) target = $region85
    $region84: #{dpad_forward.1} parent=1 // pred_region
      %149 = dma.done [#allocation9], 1024
    $region85: #{dpad_forward.1} parent=1 // pred_fallthru
      _
    // Predicated region
    $region86: #{dpad_forward.1} parent=1 // pred_check
      _
    $region87: #{dpad_forward.1} parent=1 // pred_check_branch
      %151 = sbr.rel (0) target = $region89
    $region88: #{dpad_forward.1} parent=1 // pred_region
      %152 = dma.done [#allocation9], 1024
    $region89: #{dpad_forward.1} parent=1 // pred_fallthru
      _
    // Predicated region
    $region90: #{dpad_forward.1} parent=1 // pred_check
      _
    $region91: #{dpad_forward.1} parent=1 // pred_check_branch
      %154 = sbr.rel (0) target = $region93
    $region92: #{dpad_forward.1} parent=1 // pred_region
      %155 = dma.done [#allocation12], 16
    $region93: #{dpad_forward.1} parent=1 // pred_fallthru
      _
    // Predicated region
    $region94: #{dpad_forward.1} parent=1 // pred_check
      _
    $region95: #{dpad_forward.1} parent=1 // pred_check_branch
      %157 = sbr.rel (0) target = $region97
    $region96: #{dpad_forward.1} parent=1 // pred_region
      %158 = dma.done [#allocation12], 1024
    $region97: #{dpad_forward.1} parent=1 // pred_fallthru
      _
    // Predicated region
    $region98: #{dpad_forward.1} parent=1 // pred_check
      _
    $region99: #{dpad_forward.1} parent=1 // pred_check_branch
      %160 = sbr.rel (0) target = $region101
    $region100: #{dpad_forward.1} parent=1 // pred_region
      %161 = dma.done [#allocation15], 3072
    $region101: #{dpad_forward.1} parent=1 // pred_fallthru
      _
    %v162 = vld [vmem:[#allocation2] sm:$0xff]
    %v163 = vld [vmem:[#allocation2 + $0x8] sm:$0xff]
    %v164 = vld [vmem:[#allocation2 + $0x10] sm:$0xff]
    %v165 = vld [vmem:[#allocation5] sm:$0xff]
    %v166 = vld [vmem:[#allocation5 + $0x8] sm:$0xff]
    %v167 = vld [vmem:[#allocation5 + $0x10] sm:$0xff]
    %v168 = vld [vmem:[#allocation5 + $0x18] sm:$0xff]
    %v169 = vld [vmem:[#allocation5 + $0x20] sm:$0xff]
    %v170 = vld [vmem:[#allocation5 + $0x28] sm:$0xff]
    %v171 = vld [vmem:[#allocation5 + $0x30] sm:$0xff]
    %v172 = vld [vmem:[#allocation5 + $0x38] sm:$0xff]
    %v173 = vld [vmem:[#allocation5 + $0x40] sm:$0xff]
    %v174 = vld [vmem:[#allocation5 + $0x48] sm:$0xff]
    %v175 = vld [vmem:[#allocation5 + $0x50] sm:$0xff]
    %v176 = vld [vmem:[#allocation5 + $0x58] sm:$0xff]
    %v177 = vld [vmem:[#allocation5 + $0x60] sm:$0xff]
    %v178 = vld [vmem:[#allocation5 + $0x68] sm:$0xff]
    %v179 = vld [vmem:[#allocation5 + $0x70] sm:$0xff]
    %v180 = vld [vmem:[#allocation5 + $0x78] sm:$0xff]
    %v181 = vld [vmem:[#allocation5 + $0x80] sm:$0xff]
    %v182 = vld [vmem:[#allocation5 + $0x88] sm:$0xff]
    %v183 = vld [vmem:[#allocation5 + $0x90] sm:$0xff]
    %v184 = vld [vmem:[#allocation5 + $0x98] sm:$0xff]
    %v185 = vld [vmem:[#allocation5 + $0xa0] sm:$0xff]
    %v186 = vld [vmem:[#allocation5 + $0xa8] sm:$0xff]
    %v187 = vld [vmem:[#allocation5 + $0xb0] sm:$0xff]
    %v188 = vld [vmem:[#allocation5 + $0xb8] sm:$0xff]
    %v189 = vld [vmem:[#allocation5 + $0xc0] sm:$0xff]
    %v190 = vld [vmem:[#allocation5 + $0xc8] sm:$0xff]
    %v191 = vld [vmem:[#allocation5 + $0xd0] sm:$0xff]
    %v192 = vld [vmem:[#allocation5 + $0xd8] sm:$0xff]
    %v193 = vld [vmem:[#allocation5 + $0xe0] sm:$0xff]
    %v194 = vld [vmem:[#allocation5 + $0xe8] sm:$0xff]
    %v195 = vld [vmem:[#allocation5 + $0xf0] sm:$0xff]
    %v196 = vld [vmem:[#allocation5 + $0xf8] sm:$0xff]
    %v197 = vld [vmem:[#allocation5 + $0x100] sm:$0xff]
    %v198 = vld [vmem:[#allocation5 + $0x108] sm:$0xff]
    %v199 = vld [vmem:[#allocation5 + $0x110] sm:$0xff]
    %v200 = vld [vmem:[#allocation5 + $0x118] sm:$0xff]
    %v201 = vld [vmem:[#allocation5 + $0x120] sm:$0xff]
    %v202 = vld [vmem:[#allocation5 + $0x128] sm:$0xff]
    %v203 = vld [vmem:[#allocation5 + $0x130] sm:$0xff]
    %v204 = vld [vmem:[#allocation5 + $0x138] sm:$0xff]
    %v205 = vld [vmem:[#allocation5 + $0x140] sm:$0xff]
    %v206 = vld [vmem:[#allocation5 + $0x148] sm:$0xff]
    %v207 = vld [vmem:[#allocation5 + $0x150] sm:$0xff]
    %v208 = vld [vmem:[#allocation5 + $0x158] sm:$0xff]
    %v209 = vld [vmem:[#allocation5 + $0x160] sm:$0xff]
    %v210 = vld [vmem:[#allocation5 + $0x168] sm:$0xff]
    %v211 = vld [vmem:[#allocation5 + $0x170] sm:$0xff]
    %v212 = vld [vmem:[#allocation5 + $0x178] sm:$0xff]
    %v213 = vld [vmem:[%s2] sm:$0x1]
    %v215 = vlaneseq
    %v216 = vshrl.u32 %v215, 7
    %v217 = vsub.s32 0, %v216
    %v218 = vrot.slane %v213, %v217
    %220 = vmatprep.subr.mxu0 0.0
    %221 = vmatpush1.msra.mxu0 %v180
    %222 = vmatprep.subr.mxu0 0.0
    %223 = vmatpush1.msra.mxu0 %v179
    %224 = vmatprep.subr.mxu0 0.0
    %225 = vmatpush1.msra.mxu0 %v178
    %226 = vmatprep.subr.mxu0 0.0
    %227 = vmatpush1.msra.mxu0 %v177
    %228 = vmatprep.subr.mxu0 0.0
    %229 = vmatpush1.msra.mxu0 %v176
    %230 = vmatprep.subr.mxu0 0.0
    %231 = vmatpush1.msra.mxu0 %v175
    %232 = vmatprep.subr.mxu0 0.0
    %233 = vmatpush1.msra.mxu0 %v174
    %234 = vmatprep.subr.mxu0 0.0
    %235 = vmatpush1.msra.mxu0 %v173
    %236 = vmatprep.subr.mxu0 0.0
    %237 = vmatpush1.msra.mxu0 %v172
    %238 = vmatprep.subr.mxu0 0.0
    %239 = vmatpush1.msra.mxu0 %v171
    %240 = vmatprep.subr.mxu0 0.0
    %241 = vmatpush1.msra.mxu0 %v170
    %242 = vmatprep.subr.mxu0 0.0
    %243 = vmatpush1.msra.mxu0 %v169
    %244 = vmatprep.subr.mxu0 0.0
    %245 = vmatpush1.msra.mxu0 %v168
    %246 = vmatprep.subr.mxu0 0.0
    %247 = vmatpush1.msra.mxu0 %v167
    %248 = vmatprep.subr.mxu0 0.0
    %249 = vmatpush1.msra.mxu0 %v166
    %250 = vmatprep.subr.mxu0 0.0
    %251 = vmatpush1.msra.mxu0 %v165
    %252 = vmatprep.subr.mxu0 0.0
    %253 = vmatpush2.msra.mxu0 %v196
    %254 = vmatprep.subr.mxu0 0.0
    %255 = vmatpush2.msra.mxu0 %v195
    %256 = vmatprep.subr.mxu0 0.0
    %257 = vmatpush2.msra.mxu0 %v194
    %258 = vmatprep.subr.mxu0 0.0
    %259 = vmatpush2.msra.mxu0 %v193
    %260 = vmatprep.subr.mxu0 0.0
    %261 = vmatpush2.msra.mxu0 %v192
    %262 = vmatprep.subr.mxu0 0.0
    %263 = vmatpush2.msra.mxu0 %v191
    %264 = vmatprep.subr.mxu0 0.0
    %265 = vmatpush2.msra.mxu0 %v190
    %266 = vmatprep.subr.mxu0 0.0
    %267 = vmatpush2.msra.mxu0 %v189
    %268 = vmatprep.subr.mxu0 0.0
    %269 = vmatpush2.msra.mxu0 %v188
    %270 = vmatprep.subr.mxu0 0.0
    %271 = vmatpush2.msra.mxu0 %v187
    %272 = vmatprep.subr.mxu0 0.0
    %273 = vmatpush2.msra.mxu0 %v186
    %274 = vmatprep.subr.mxu0 0.0
    %275 = vmatpush2.msra.mxu0 %v185
    %276 = vmatprep.subr.mxu0 0.0
    %277 = vmatpush2.msra.mxu0 %v184
    %278 = vmatprep.subr.mxu0 0.0
    %279 = vmatpush2.msra.mxu0 %v183
    %280 = vmatprep.subr.mxu0 0.0
    %281 = vmatpush2.msra.mxu0 %v182
    %282 = vmatprep.subr.mxu0 0.0
    %283 = vmatpush2.msra.mxu0 %v181
    %284 = vmatprep.mubr.f32.mxu0 %v163
    %285 = vmatmul.mubr.f32.gmra.mxu0 %v162
    %v286 = vpop.f32.mrf.mxu0
    %v287 = vadd.f32 %v218, %v286
    %v288 = vpop.f32.mrf.mxu0
    %289 = vdwg.mxu0
    %290 = vmatprep.subr.mxu0 0.0
    %291 = vmatpush1.msra.mxu0 %v212
    %292 = vmatprep.subr.mxu0 0.0
    %293 = vmatpush1.msra.mxu0 %v211
    %294 = vmatprep.subr.mxu0 0.0
    %295 = vmatpush1.msra.mxu0 %v210
    %296 = vmatprep.subr.mxu0 0.0
    %297 = vmatpush1.msra.mxu0 %v209
    %298 = vmatprep.subr.mxu0 0.0
    %299 = vmatpush1.msra.mxu0 %v208
    %300 = vmatprep.subr.mxu0 0.0
    %301 = vmatpush1.msra.mxu0 %v207
    %302 = vmatprep.subr.mxu0 0.0
    %303 = vmatpush1.msra.mxu0 %v206
    %304 = vmatprep.subr.mxu0 0.0
    %305 = vmatpush1.msra.mxu0 %v205
    %306 = vmatprep.subr.mxu0 0.0
    %307 = vmatpush1.msra.mxu0 %v204
    %308 = vmatprep.subr.mxu0 0.0
    %309 = vmatpush1.msra.mxu0 %v203
    %310 = vmatprep.subr.mxu0 0.0
    %311 = vmatpush1.msra.mxu0 %v202
    %312 = vmatprep.subr.mxu0 0.0
    %313 = vmatpush1.msra.mxu0 %v201
    %314 = vmatprep.subr.mxu0 0.0
    %315 = vmatpush1.msra.mxu0 %v200
    %316 = vmatprep.subr.mxu0 0.0
    %317 = vmatpush1.msra.mxu0 %v199
    %318 = vmatprep.subr.mxu0 0.0
    %319 = vmatpush1.msra.mxu0 %v198
    %320 = vmatprep.subr.mxu0 0.0
    %321 = vmatpush1.msra.mxu0 %v197
    %322 = vmatprep.subr.mxu0 0.0
    %323 = vmatpush2.msra.mxu0 0.0
    %324 = vmatprep.subr.mxu0 0.0
    %325 = vmatpush2.msra.mxu0 0.0
    %326 = vmatprep.subr.mxu0 0.0
    %327 = vmatpush2.msra.mxu0 0.0
    %328 = vmatprep.subr.mxu0 0.0
    %329 = vmatpush2.msra.mxu0 0.0
    %330 = vmatprep.subr.mxu0 0.0
    %331 = vmatpush2.msra.mxu0 0.0
    %332 = vmatprep.subr.mxu0 0.0
    %333 = vmatpush2.msra.mxu0 0.0
    %334 = vmatprep.subr.mxu0 0.0
    %335 = vmatpush2.msra.mxu0 0.0
    %336 = vmatprep.subr.mxu0 0.0
    %337 = vmatpush2.msra.mxu0 0.0
    %338 = vmatprep.subr.mxu0 0.0
    %339 = vmatpush2.msra.mxu0 0.0
    %340 = vmatprep.subr.mxu0 0.0
    %341 = vmatpush2.msra.mxu0 0.0
    %342 = vmatprep.subr.mxu0 0.0
    %343 = vmatpush2.msra.mxu0 0.0
    %344 = vmatprep.subr.mxu0 0.0
    %345 = vmatpush2.msra.mxu0 0.0
    %346 = vmatprep.subr.mxu0 0.0
    %347 = vmatpush2.msra.mxu0 0.0
    %348 = vmatprep.subr.mxu0 0.0
    %349 = vmatpush2.msra.mxu0 0.0
    %350 = vmatprep.subr.mxu0 0.0
    %351 = vmatpush2.msra.mxu0 0.0
    %352 = vmatprep.subr.mxu0 0.0
    %353 = vmatpush2.msra.mxu0 0.0
    %354 = vmatprep.mubr.f32.mxu0 0.0
    %355 = vmatmul.mubr.f32.gmra.mxu0 %v164
    %v356 = vpop.f32.mrf.mxu0
    %v357 = vadd.f32 %v287, %v356
    %v358 = vpop.f32.mrf.mxu0
    %359 = vdwg.mxu0
    %v360 = vld [vmem:[#allocation7] sm:$0xff]
    %v361 = vld [vmem:[#allocation7 + $0x8] sm:$0xff]
    %v362 = vld [vmem:[#allocation7 + $0x10] sm:$0xff]
    %v363 = vld [vmem:[#allocation7 + $0x18] sm:$0xff]
    %v364 = vld [vmem:[#allocation7 + $0x20] sm:$0xff]
    %v365 = vld [vmem:[#allocation7 + $0x28] sm:$0xff]
    %v366 = vld [vmem:[#allocation7 + $0x30] sm:$0xff]
    %v367 = vld [vmem:[#allocation7 + $0x38] sm:$0xff]
    %v368 = vld [vmem:[%s4] sm:$0x1]
    %v370 = vlaneseq
    %v371 = vshrl.u32 %v370, 7
    %v372 = vsub.s32 0, %v371
    %v373 = vrot.slane %v368, %v372
    %vm375 = vcmask 523264
    %v377 = vsel %vm375, %v357, 0
    %379 = vmatprep.subr.mxu0 0.0
    %380 = vmatpush1.msra.mxu0 0.0
    %381 = vmatprep.subr.mxu0 0.0
    %382 = vmatpush1.msra.mxu0 0.0
    %383 = vmatprep.subr.mxu0 0.0
    %384 = vmatpush1.msra.mxu0 0.0
    %385 = vmatprep.subr.mxu0 0.0
    %386 = vmatpush1.msra.mxu0 0.0
    %387 = vmatprep.subr.mxu0 0.0
    %388 = vmatpush1.msra.mxu0 0.0
    %389 = vmatprep.subr.mxu0 0.0
    %390 = vmatpush1.msra.mxu0 0.0
    %391 = vmatprep.subr.mxu0 0.0
    %392 = vmatpush1.msra.mxu0 0.0
    %393 = vmatprep.subr.mxu0 0.0
    %394 = vmatpush1.msra.mxu0 0.0
    %395 = vmatprep.subr.mxu0 0.0
    %396 = vmatpush1.msra.mxu0 %v367
    %397 = vmatprep.subr.mxu0 0.0
    %398 = vmatpush1.msra.mxu0 %v366
    %399 = vmatprep.subr.mxu0 0.0
    %400 = vmatpush1.msra.mxu0 %v365
    %401 = vmatprep.subr.mxu0 0.0
    %402 = vmatpush1.msra.mxu0 %v364
    %403 = vmatprep.subr.mxu0 0.0
    %404 = vmatpush1.msra.mxu0 %v363
    %405 = vmatprep.subr.mxu0 0.0
    %406 = vmatpush1.msra.mxu0 %v362
    %407 = vmatprep.subr.mxu0 0.0
    %408 = vmatpush1.msra.mxu0 %v361
    %409 = vmatprep.subr.mxu0 0.0
    %410 = vmatpush1.msra.mxu0 %v360
    %411 = vmatprep.subr.mxu0 0.0
    %412 = vmatpush2.msra.mxu0 0.0
    %413 = vmatprep.subr.mxu0 0.0
    %414 = vmatpush2.msra.mxu0 0.0
    %415 = vmatprep.subr.mxu0 0.0
    %416 = vmatpush2.msra.mxu0 0.0
    %417 = vmatprep.subr.mxu0 0.0
    %418 = vmatpush2.msra.mxu0 0.0
    %419 = vmatprep.subr.mxu0 0.0
    %420 = vmatpush2.msra.mxu0 0.0
    %421 = vmatprep.subr.mxu0 0.0
    %422 = vmatpush2.msra.mxu0 0.0
    %423 = vmatprep.subr.mxu0 0.0
    %424 = vmatpush2.msra.mxu0 0.0
    %425 = vmatprep.subr.mxu0 0.0
    %426 = vmatpush2.msra.mxu0 0.0
    %427 = vmatprep.subr.mxu0 0.0
    %428 = vmatpush2.msra.mxu0 0.0
    %429 = vmatprep.subr.mxu0 0.0
    %430 = vmatpush2.msra.mxu0 0.0
    %431 = vmatprep.subr.mxu0 0.0
    %432 = vmatpush2.msra.mxu0 0.0
    %433 = vmatprep.subr.mxu0 0.0
    %434 = vmatpush2.msra.mxu0 0.0
    %435 = vmatprep.subr.mxu0 0.0
    %436 = vmatpush2.msra.mxu0 0.0
    %437 = vmatprep.subr.mxu0 0.0
    %438 = vmatpush2.msra.mxu0 0.0
    %439 = vmatprep.subr.mxu0 0.0
    %440 = vmatpush2.msra.mxu0 0.0
    %441 = vmatprep.subr.mxu0 0.0
    %442 = vmatpush2.msra.mxu0 0.0
    %443 = vmatprep.mubr.f32.mxu0 0.0
    %444 = vmatmul.mubr.f32.gmra.mxu0 %v377
    %v445 = vpop.f32.mrf.mxu0
    %v446 = vadd.f32 %v373, %v445
    %v447 = vpop.f32.mrf.mxu0
    %448 = vdwg.mxu0
    %v449 = vmul.f32 %v446, 0.5
    %v450 = vmul.f32 %v446, 0.70710677
    %v451 = verf.f32.pop %v450
    %v452 = vadd.f32 %v451, 1.0
    %v453 = vmul.f32 %v449, %v452
    %v454 = vadd.f32 %v357, %v453
    %v455 = vld [vmem:[#allocation8] sm:$0xff]
    %v456 = vld [vmem:[#allocation8 + $0x8] sm:$0xff]
    %v457 = vld [vmem:[#allocation8 + $0x10] sm:$0xff]
    %v458 = vld [vmem:[#allocation8 + $0x18] sm:$0xff]
    %v459 = vld [vmem:[#allocation8 + $0x20] sm:$0xff]
    %v460 = vld [vmem:[#allocation8 + $0x28] sm:$0xff]
    %v461 = vld [vmem:[#allocation8 + $0x30] sm:$0xff]
    %v462 = vld [vmem:[#allocation8 + $0x38] sm:$0xff]
    %v463 = vld [vmem:[%s6] sm:$0x1]
    %v465 = vlaneseq
    %v466 = vshrl.u32 %v465, 7
    %v467 = vsub.s32 0, %v466
    %v468 = vrot.slane %v463, %v467
    %v471 = vsel %vm375, %v454, 0
    %473 = vmatprep.subr.mxu0 0.0
    %474 = vmatpush1.msra.mxu0 0.0
    %475 = vmatprep.subr.mxu0 0.0
    %476 = vmatpush1.msra.mxu0 0.0
    %477 = vmatprep.subr.mxu0 0.0
    %478 = vmatpush1.msra.mxu0 0.0
    %479 = vmatprep.subr.mxu0 0.0
    %480 = vmatpush1.msra.mxu0 0.0
    %481 = vmatprep.subr.mxu0 0.0
    %482 = vmatpush1.msra.mxu0 0.0
    %483 = vmatprep.subr.mxu0 0.0
    %484 = vmatpush1.msra.mxu0 0.0
    %485 = vmatprep.subr.mxu0 0.0
    %486 = vmatpush1.msra.mxu0 0.0
    %487 = vmatprep.subr.mxu0 0.0
    %488 = vmatpush1.msra.mxu0 0.0
    %489 = vmatprep.subr.mxu0 0.0
    %490 = vmatpush1.msra.mxu0 %v462
    %491 = vmatprep.subr.mxu0 0.0
    %492 = vmatpush1.msra.mxu0 %v461
    %493 = vmatprep.subr.mxu0 0.0
    %494 = vmatpush1.msra.mxu0 %v460
    %495 = vmatprep.subr.mxu0 0.0
    %496 = vmatpush1.msra.mxu0 %v459
    %497 = vmatprep.subr.mxu0 0.0
    %498 = vmatpush1.msra.mxu0 %v458
    %499 = vmatprep.subr.mxu0 0.0
    %500 = vmatpush1.msra.mxu0 %v457
    %501 = vmatprep.subr.mxu0 0.0
    %502 = vmatpush1.msra.mxu0 %v456
    %503 = vmatprep.subr.mxu0 0.0
    %504 = vmatpush1.msra.mxu0 %v455
    %505 = vmatprep.subr.mxu0 0.0
    %506 = vmatpush2.msra.mxu0 0.0
    %507 = vmatprep.subr.mxu0 0.0
    %508 = vmatpush2.msra.mxu0 0.0
    %509 = vmatprep.subr.mxu0 0.0
    %510 = vmatpush2.msra.mxu0 0.0
    %511 = vmatprep.subr.mxu0 0.0
    %512 = vmatpush2.msra.mxu0 0.0
    %513 = vmatprep.subr.mxu0 0.0
    %514 = vmatpush2.msra.mxu0 0.0
    %515 = vmatprep.subr.mxu0 0.0
    %516 = vmatpush2.msra.mxu0 0.0
    %517 = vmatprep.subr.mxu0 0.0
    %518 = vmatpush2.msra.mxu0 0.0
    %519 = vmatprep.subr.mxu0 0.0
    %520 = vmatpush2.msra.mxu0 0.0
    %521 = vmatprep.subr.mxu0 0.0
    %522 = vmatpush2.msra.mxu0 0.0
    %523 = vmatprep.subr.mxu0 0.0
    %524 = vmatpush2.msra.mxu0 0.0
    %525 = vmatprep.subr.mxu0 0.0
    %526 = vmatpush2.msra.mxu0 0.0
    %527 = vmatprep.subr.mxu0 0.0
    %528 = vmatpush2.msra.mxu0 0.0
    %529 = vmatprep.subr.mxu0 0.0
    %530 = vmatpush2.msra.mxu0 0.0
    %531 = vmatprep.subr.mxu0 0.0
    %532 = vmatpush2.msra.mxu0 0.0
    %533 = vmatprep.subr.mxu0 0.0
    %534 = vmatpush2.msra.mxu0 0.0
    %535 = vmatprep.subr.mxu0 0.0
    %536 = vmatpush2.msra.mxu0 0.0
    %537 = vmatprep.mubr.f32.mxu0 0.0
    %538 = vmatmul.mubr.f32.gmra.mxu0 %v471
    %v539 = vpop.f32.mrf.mxu0
    %v540 = vadd.f32 %v468, %v539
    %v541 = vpop.f32.mrf.mxu0
    %542 = vdwg.mxu0
    %v543 = vmul.f32 %v540, 0.5
    %v544 = vmul.f32 %v540, 0.70710677
    %v545 = verf.f32.pop %v544
    %v546 = vadd.f32 %v545, 1.0
    %v547 = vmul.f32 %v543, %v546
    %v548 = vadd.f32 %v454, %v547
    %v549 = vld [vmem:[#allocation10] sm:$0xff]
    %v550 = vld [vmem:[#allocation10 + $0x8] sm:$0xff]
    %v551 = vld [vmem:[#allocation10 + $0x10] sm:$0xff]
    %v552 = vld [vmem:[#allocation10 + $0x18] sm:$0xff]
    %v553 = vld [vmem:[#allocation10 + $0x20] sm:$0xff]
    %v554 = vld [vmem:[#allocation10 + $0x28] sm:$0xff]
    %v555 = vld [vmem:[#allocation10 + $0x30] sm:$0xff]
    %v556 = vld [vmem:[#allocation10 + $0x38] sm:$0xff]
    %v557 = vld [vmem:[#allocation11] sm:$0x1]
    %v559 = vlaneseq
    %v560 = vshrl.u32 %v559, 7
    %v561 = vsub.s32 0, %v560
    %v562 = vrot.slane %v557, %v561
    %v565 = vsel %vm375, %v548, 0
    %567 = vmatprep.subr.mxu0 0.0
    %568 = vmatpush1.msra.mxu0 0.0
    %569 = vmatprep.subr.mxu0 0.0
    %570 = vmatpush1.msra.mxu0 0.0
    %571 = vmatprep.subr.mxu0 0.0
    %572 = vmatpush1.msra.mxu0 0.0
    %573 = vmatprep.subr.mxu0 0.0
    %574 = vmatpush1.msra.mxu0 0.0
    %575 = vmatprep.subr.mxu0 0.0
    %576 = vmatpush1.msra.mxu0 0.0
    %577 = vmatprep.subr.mxu0 0.0
    %578 = vmatpush1.msra.mxu0 0.0
    %579 = vmatprep.subr.mxu0 0.0
    %580 = vmatpush1.msra.mxu0 0.0
    %581 = vmatprep.subr.mxu0 0.0
    %582 = vmatpush1.msra.mxu0 0.0
    %583 = vmatprep.subr.mxu0 0.0
    %584 = vmatpush1.msra.mxu0 %v556
    %585 = vmatprep.subr.mxu0 0.0
    %586 = vmatpush1.msra.mxu0 %v555
    %587 = vmatprep.subr.mxu0 0.0
    %588 = vmatpush1.msra.mxu0 %v554
    %589 = vmatprep.subr.mxu0 0.0
    %590 = vmatpush1.msra.mxu0 %v553
    %591 = vmatprep.subr.mxu0 0.0
    %592 = vmatpush1.msra.mxu0 %v552
    %593 = vmatprep.subr.mxu0 0.0
    %594 = vmatpush1.msra.mxu0 %v551
    %595 = vmatprep.subr.mxu0 0.0
    %596 = vmatpush1.msra.mxu0 %v550
    %597 = vmatprep.subr.mxu0 0.0
    %598 = vmatpush1.msra.mxu0 %v549
    %599 = vmatprep.subr.mxu0 0.0
    %600 = vmatpush2.msra.mxu0 0.0
    %601 = vmatprep.subr.mxu0 0.0
    %602 = vmatpush2.msra.mxu0 0.0
    %603 = vmatprep.subr.mxu0 0.0
    %604 = vmatpush2.msra.mxu0 0.0
    %605 = vmatprep.subr.mxu0 0.0
    %606 = vmatpush2.msra.mxu0 0.0
    %607 = vmatprep.subr.mxu0 0.0
    %608 = vmatpush2.msra.mxu0 0.0
    %609 = vmatprep.subr.mxu0 0.0
    %610 = vmatpush2.msra.mxu0 0.0
    %611 = vmatprep.subr.mxu0 0.0
    %612 = vmatpush2.msra.mxu0 0.0
    %613 = vmatprep.subr.mxu0 0.0
    %614 = vmatpush2.msra.mxu0 0.0
    %615 = vmatprep.subr.mxu0 0.0
    %616 = vmatpush2.msra.mxu0 0.0
    %617 = vmatprep.subr.mxu0 0.0
    %618 = vmatpush2.msra.mxu0 0.0
    %619 = vmatprep.subr.mxu0 0.0
    %620 = vmatpush2.msra.mxu0 0.0
    %621 = vmatprep.subr.mxu0 0.0
    %622 = vmatpush2.msra.mxu0 0.0
    %623 = vmatprep.subr.mxu0 0.0
    %624 = vmatpush2.msra.mxu0 0.0
    %625 = vmatprep.subr.mxu0 0.0
    %626 = vmatpush2.msra.mxu0 0.0
    %627 = vmatprep.subr.mxu0 0.0
    %628 = vmatpush2.msra.mxu0 0.0
    %629 = vmatprep.subr.mxu0 0.0
    %630 = vmatpush2.msra.mxu0 0.0
    %631 = vmatprep.mubr.f32.mxu0 0.0
    %632 = vmatmul.mubr.f32.gmra.mxu0 %v565
    %v633 = vpop.f32.mrf.mxu0
    %v634 = vadd.f32 %v562, %v633
    %v635 = vpop.f32.mrf.mxu0
    %636 = vdwg.mxu0
    %637 = vrot.lane.b32.xlu0 %v357, 64
    %v638 = vpop.permute.xlu0 %637
    %v640 = vsel %vm375, %v638, 0.0
    %641 = vadd.xlane.f32.xlu0 %v640
    %v642 = vpop.xlane.xlu0 %641
    %v643 = vrcp.pop 64.0
    %v644 = vmul.f32 %v642, %v643
    %v645 = vsub.f32 %v357, %v644
    %v646 = vmul.f32 %v645, %v645
    %648 = vrot.lane.b32.xlu0 %v646, 64
    %v649 = vpop.permute.xlu0 %648
    %v651 = vsel %vm375, %v649, 0.0
    %652 = vadd.xlane.f32.xlu0 %v651
    %v653 = vpop.xlane.xlu0 %652
    %v654 = vmul.f32 %v653, %v643
    %v655 = vadd.f32 %v654, 1e-05
    %v656 = vrsqrt.pop %v655
    %v657 = vmul.f32 %v645, %v656
    %v658 = vld [vmem:[%s9] sm:$0x1]
    %v660 = vlaneseq
    %v661 = vshrl.u32 %v660, 7
    %v662 = vsub.s32 0, %v661
    %v663 = vrot.slane %v658, %v662
    %664 = vrot.lane.b32.xlu0 %v663, 64
    %v665 = vpop.permute.xlu0 %664
    %v667 = vmul.f32 %v657, %v665
    %v668 = vld [vmem:[%s10] sm:$0x1]
    %v670 = vlaneseq
    %v671 = vshrl.u32 %v670, 7
    %v672 = vsub.s32 0, %v671
    %v673 = vrot.slane %v668, %v672
    %674 = vrot.lane.b32.xlu0 %v673, 64
    %v675 = vpop.permute.xlu0 %674
    %v677 = vadd.f32 %v667, %v675
    %v678 = vmax.f32 %v677, 0.0
    %v679 = vld [vmem:[#allocation13] sm:$0xff]
    %v680 = vld [vmem:[#allocation13 + $0x8] sm:$0xff]
    %v681 = vld [vmem:[#allocation13 + $0x10] sm:$0xff]
    %v682 = vld [vmem:[#allocation13 + $0x18] sm:$0xff]
    %v683 = vld [vmem:[#allocation13 + $0x20] sm:$0xff]
    %v684 = vld [vmem:[#allocation13 + $0x28] sm:$0xff]
    %v685 = vld [vmem:[#allocation13 + $0x30] sm:$0xff]
    %v686 = vld [vmem:[#allocation13 + $0x38] sm:$0xff]
    %v687 = vld [vmem:[%s12] sm:$0x1]
    %v689 = vlaneseq
    %v690 = vshrl.u32 %v689, 7
    %v691 = vsub.s32 0, %v690
    %v692 = vrot.slane %v687, %v691
    %695 = vrot.lane.b32.xlu0 %v678, 64
    %v696 = vpop.permute.xlu0 %695
    %v697 = vsel %vm375, %v696, 0
    %699 = vmatprep.subr.mxu0 0.0
    %700 = vmatpush1.msra.mxu0 0.0
    %701 = vmatprep.subr.mxu0 0.0
    %702 = vmatpush1.msra.mxu0 0.0
    %703 = vmatprep.subr.mxu0 0.0
    %704 = vmatpush1.msra.mxu0 0.0
    %705 = vmatprep.subr.mxu0 0.0
    %706 = vmatpush1.msra.mxu0 0.0
    %707 = vmatprep.subr.mxu0 0.0
    %708 = vmatpush1.msra.mxu0 0.0
    %709 = vmatprep.subr.mxu0 0.0
    %710 = vmatpush1.msra.mxu0 0.0
    %711 = vmatprep.subr.mxu0 0.0
    %712 = vmatpush1.msra.mxu0 0.0
    %713 = vmatprep.subr.mxu0 0.0
    %714 = vmatpush1.msra.mxu0 0.0
    %715 = vmatprep.subr.mxu0 0.0
    %716 = vmatpush1.msra.mxu0 %v686
    %717 = vmatprep.subr.mxu0 0.0
    %718 = vmatpush1.msra.mxu0 %v685
    %719 = vmatprep.subr.mxu0 0.0
    %720 = vmatpush1.msra.mxu0 %v684
    %721 = vmatprep.subr.mxu0 0.0
    %722 = vmatpush1.msra.mxu0 %v683
    %723 = vmatprep.subr.mxu0 0.0
    %724 = vmatpush1.msra.mxu0 %v682
    %725 = vmatprep.subr.mxu0 0.0
    %726 = vmatpush1.msra.mxu0 %v681
    %727 = vmatprep.subr.mxu0 0.0
    %728 = vmatpush1.msra.mxu0 %v680
    %729 = vmatprep.subr.mxu0 0.0
    %730 = vmatpush1.msra.mxu0 %v679
    %731 = vmatprep.subr.mxu0 0.0
    %732 = vmatpush2.msra.mxu0 0.0
    %733 = vmatprep.subr.mxu0 0.0
    %734 = vmatpush2.msra.mxu0 0.0
    %735 = vmatprep.subr.mxu0 0.0
    %736 = vmatpush2.msra.mxu0 0.0
    %737 = vmatprep.subr.mxu0 0.0
    %738 = vmatpush2.msra.mxu0 0.0
    %739 = vmatprep.subr.mxu0 0.0
    %740 = vmatpush2.msra.mxu0 0.0
    %741 = vmatprep.subr.mxu0 0.0
    %742 = vmatpush2.msra.mxu0 0.0
    %743 = vmatprep.subr.mxu0 0.0
    %744 = vmatpush2.msra.mxu0 0.0
    %745 = vmatprep.subr.mxu0 0.0
    %746 = vmatpush2.msra.mxu0 0.0
    %747 = vmatprep.subr.mxu0 0.0
    %748 = vmatpush2.msra.mxu0 0.0
    %749 = vmatprep.subr.mxu0 0.0
    %750 = vmatpush2.msra.mxu0 0.0
    %751 = vmatprep.subr.mxu0 0.0
    %752 = vmatpush2.msra.mxu0 0.0
    %753 = vmatprep.subr.mxu0 0.0
    %754 = vmatpush2.msra.mxu0 0.0
    %755 = vmatprep.subr.mxu0 0.0
    %756 = vmatpush2.msra.mxu0 0.0
    %757 = vmatprep.subr.mxu0 0.0
    %758 = vmatpush2.msra.mxu0 0.0
    %759 = vmatprep.subr.mxu0 0.0
    %760 = vmatpush2.msra.mxu0 0.0
    %761 = vmatprep.subr.mxu0 0.0
    %762 = vmatpush2.msra.mxu0 0.0
    %763 = vmatprep.mubr.f32.mxu0 0.0
    %764 = vmatmul.mubr.f32.gmra.mxu0 %v697
    %v765 = vpop.f32.mrf.mxu0
    %v766 = vadd.f32 %v692, %v765
    %v767 = vpop.f32.mrf.mxu0
    %768 = vdwg.mxu0
    %v769 = vadd.f32 %v634, %v766
    %v770 = vsel %vm375, %v769, 0.0
    %771 = vadd.xlane.f32.xlu0 %v770
    %v772 = vpop.xlane.xlu0 %771
    %v773 = vmul.f32 %v772, %v643
    %v774 = vsub.f32 %v769, %v773
    %v775 = vmul.f32 %v774, %v774
    %v776 = vsel %vm375, %v775, 0.0
    %777 = vadd.xlane.f32.xlu0 %v776
    %v778 = vpop.xlane.xlu0 %777
    %v779 = vmul.f32 %v778, %v643
    %v780 = vadd.f32 %v779, 1e-05
    %v781 = vrsqrt.pop %v780
    %v782 = vmul.f32 %v774, %v781
    %v783 = vld [vmem:[%s13] sm:$0x1]
    %v785 = vlaneseq
    %v786 = vshrl.u32 %v785, 7
    %v787 = vsub.s32 0, %v786
    %v788 = vrot.slane %v783, %v787
    %v790 = vmul.f32 %v782, %v788
    %v791 = vld [vmem:[%s14] sm:$0x1]
    %v793 = vlaneseq
    %v794 = vshrl.u32 %v793, 7
    %v795 = vsub.s32 0, %v794
    %v796 = vrot.slane %v791, %v795
    %v798 = vadd.f32 %v790, %v796
    %v799 = vld [vmem:[#allocation14] sm:$0xff]
    %v800 = vld [vmem:[#allocation14 + $0x8] sm:$0xff]
    %v801 = vld [vmem:[#allocation14 + $0x10] sm:$0xff]
    %v802 = vld [vmem:[#allocation14 + $0x18] sm:$0xff]
    %v803 = vld [vmem:[#allocation14 + $0x20] sm:$0xff]
    %v804 = vld [vmem:[#allocation14 + $0x28] sm:$0xff]
    %v805 = vld [vmem:[#allocation14 + $0x30] sm:$0xff]
    %v806 = vld [vmem:[#allocation14 + $0x38] sm:$0xff]
    %v807 = vld [vmem:[#allocation14 + $0x40] sm:$0xff]
    %v808 = vld [vmem:[#allocation14 + $0x48] sm:$0xff]
    %v809 = vld [vmem:[#allocation14 + $0x50] sm:$0xff]
    %v810 = vld [vmem:[#allocation14 + $0x58] sm:$0xff]
    %v811 = vld [vmem:[#allocation14 + $0x60] sm:$0xff]
    %v812 = vld [vmem:[#allocation14 + $0x68] sm:$0xff]
    %v813 = vld [vmem:[#allocation14 + $0x70] sm:$0xff]
    %v814 = vld [vmem:[#allocation14 + $0x78] sm:$0xff]
    %v815 = vld [vmem:[#allocation14 + $0x80] sm:$0xff]
    %v816 = vld [vmem:[#allocation14 + $0x88] sm:$0xff]
    %v817 = vld [vmem:[#allocation14 + $0x90] sm:$0xff]
    %v818 = vld [vmem:[#allocation14 + $0x98] sm:$0xff]
    %v819 = vld [vmem:[#allocation14 + $0xa0] sm:$0xff]
    %v820 = vld [vmem:[#allocation14 + $0xa8] sm:$0xff]
    %v821 = vld [vmem:[#allocation14 + $0xb0] sm:$0xff]
    %v822 = vld [vmem:[#allocation14 + $0xb8] sm:$0xff]
    %v823 = vld [vmem:[%s16] sm:$0x7]
    %v825 = vlaneseq
    %v826 = vshrl.u32 %v825, 7
    %v827 = vsub.s32 0, %v826
    %v828 = vrot.slane %v823, %v827
    %v829 = vlaneseq
    %v830 = vshrl.u32 %v829, 7
    %v831 = vsub.s32 1, %v830
    %v832 = vrot.slane %v823, %v831
    %v833 = vlaneseq
    %v834 = vshrl.u32 %v833, 7
    %v835 = vsub.s32 2, %v834
    %v836 = vrot.slane %v823, %v835
    %v841 = vsel %vm375, %v798, 0
    %843 = vmatprep.subr.mxu0 0.0
    %844 = vmatpush1.msra.mxu0 0.0
    %845 = vmatprep.subr.mxu0 0.0
    %846 = vmatpush1.msra.mxu0 0.0
    %847 = vmatprep.subr.mxu0 0.0
    %848 = vmatpush1.msra.mxu0 0.0
    %849 = vmatprep.subr.mxu0 0.0
    %850 = vmatpush1.msra.mxu0 0.0
    %851 = vmatprep.subr.mxu0 0.0
    %852 = vmatpush1.msra.mxu0 0.0
    %853 = vmatprep.subr.mxu0 0.0
    %854 = vmatpush1.msra.mxu0 0.0
    %855 = vmatprep.subr.mxu0 0.0
    %856 = vmatpush1.msra.mxu0 0.0
    %857 = vmatprep.subr.mxu0 0.0
    %858 = vmatpush1.msra.mxu0 0.0
    %859 = vmatprep.subr.mxu0 %v821
    %860 = vmatpush1.msra.mxu0 %v820
    %861 = vmatprep.subr.mxu0 %v818
    %862 = vmatpush1.msra.mxu0 %v817
    %863 = vmatprep.subr.mxu0 %v815
    %864 = vmatpush1.msra.mxu0 %v814
    %865 = vmatprep.subr.mxu0 %v812
    %866 = vmatpush1.msra.mxu0 %v811
    %867 = vmatprep.subr.mxu0 %v809
    %868 = vmatpush1.msra.mxu0 %v808
    %869 = vmatprep.subr.mxu0 %v806
    %870 = vmatpush1.msra.mxu0 %v805
    %871 = vmatprep.subr.mxu0 %v803
    %872 = vmatpush1.msra.mxu0 %v802
    %873 = vmatprep.subr.mxu0 %v800
    %874 = vmatpush1.msra.mxu0 %v799
    %875 = vmatprep.subr.mxu0 0.0
    %876 = vmatpush2.msra.mxu0 0.0
    %877 = vmatprep.subr.mxu0 0.0
    %878 = vmatpush2.msra.mxu0 0.0
    %879 = vmatprep.subr.mxu0 0.0
    %880 = vmatpush2.msra.mxu0 0.0
    %881 = vmatprep.subr.mxu0 0.0
    %882 = vmatpush2.msra.mxu0 0.0
    %883 = vmatprep.subr.mxu0 0.0
    %884 = vmatpush2.msra.mxu0 0.0
    %885 = vmatprep.subr.mxu0 0.0
    %886 = vmatpush2.msra.mxu0 0.0
    %887 = vmatprep.subr.mxu0 0.0
    %888 = vmatpush2.msra.mxu0 0.0
    %889 = vmatprep.subr.mxu0 0.0
    %890 = vmatpush2.msra.mxu0 0.0
    %891 = vmatprep.subr.mxu0 0.0
    %892 = vmatpush2.msra.mxu0 0.0
    %893 = vmatprep.subr.mxu0 0.0
    %894 = vmatpush2.msra.mxu0 0.0
    %895 = vmatprep.subr.mxu0 0.0
    %896 = vmatpush2.msra.mxu0 0.0
    %897 = vmatprep.subr.mxu0 0.0
    %898 = vmatpush2.msra.mxu0 0.0
    %899 = vmatprep.subr.mxu0 0.0
    %900 = vmatpush2.msra.mxu0 0.0
    %901 = vmatprep.subr.mxu0 0.0
    %902 = vmatpush2.msra.mxu0 0.0
    %903 = vmatprep.subr.mxu0 0.0
    %904 = vmatpush2.msra.mxu0 0.0
    %905 = vmatprep.subr.mxu0 0.0
    %906 = vmatpush2.msra.mxu0 0.0
    %907 = vmatprep.mubr.f32.mxu0 0.0
    %908 = vmatmul.mubr.f32.gmra.mxu0 %v841
    %v909 = vpop.f32.mrf.mxu0
    %v910 = vadd.f32 %v828, %v909
    %v911 = vpop.f32.mrf.mxu0
    %v912 = vadd.f32 %v832, %v911
    %913 = vdwg.mxu0
    %914 = vmatprep.subr.mxu0 0.0
    %915 = vmatpush1.msra.mxu0 0.0
    %916 = vmatprep.subr.mxu0 0.0
    %917 = vmatpush1.msra.mxu0 0.0
    %918 = vmatprep.subr.mxu0 0.0
    %919 = vmatpush1.msra.mxu0 0.0
    %920 = vmatprep.subr.mxu0 0.0
    %921 = vmatpush1.msra.mxu0 0.0
    %922 = vmatprep.subr.mxu0 0.0
    %923 = vmatpush1.msra.mxu0 0.0
    %924 = vmatprep.subr.mxu0 0.0
    %925 = vmatpush1.msra.mxu0 0.0
    %926 = vmatprep.subr.mxu0 0.0
    %927 = vmatpush1.msra.mxu0 0.0
    %928 = vmatprep.subr.mxu0 0.0
    %929 = vmatpush1.msra.mxu0 0.0
    %930 = vmatprep.subr.mxu0 0.0
    %931 = vmatpush1.msra.mxu0 %v822
    %932 = vmatprep.subr.mxu0 0.0
    %933 = vmatpush1.msra.mxu0 %v819
    %934 = vmatprep.subr.mxu0 0.0
    %935 = vmatpush1.msra.mxu0 %v816
    %936 = vmatprep.subr.mxu0 0.0
    %937 = vmatpush1.msra.mxu0 %v813
    %938 = vmatprep.subr.mxu0 0.0
    %939 = vmatpush1.msra.mxu0 %v810
    %940 = vmatprep.subr.mxu0 0.0
    %941 = vmatpush1.msra.mxu0 %v807
    %942 = vmatprep.subr.mxu0 0.0
    %943 = vmatpush1.msra.mxu0 %v804
    %944 = vmatprep.subr.mxu0 0.0
    %945 = vmatpush1.msra.mxu0 %v801
    %946 = vmatprep.subr.mxu0 0.0
    %947 = vmatpush2.msra.mxu0 0.0
    %948 = vmatprep.subr.mxu0 0.0
    %949 = vmatpush2.msra.mxu0 0.0
    %950 = vmatprep.subr.mxu0 0.0
    %951 = vmatpush2.msra.mxu0 0.0
    %952 = vmatprep.subr.mxu0 0.0
    %953 = vmatpush2.msra.mxu0 0.0
    %954 = vmatprep.subr.mxu0 0.0
    %955 = vmatpush2.msra.mxu0 0.0
    %956 = vmatprep.subr.mxu0 0.0
    %957 = vmatpush2.msra.mxu0 0.0
    %958 = vmatprep.subr.mxu0 0.0
    %959 = vmatpush2.msra.mxu0 0.0
    %960 = vmatprep.subr.mxu0 0.0
    %961 = vmatpush2.msra.mxu0 0.0
    %962 = vmatprep.subr.mxu0 0.0
    %963 = vmatpush2.msra.mxu0 0.0
    %964 = vmatprep.subr.mxu0 0.0
    %965 = vmatpush2.msra.mxu0 0.0
    %966 = vmatprep.subr.mxu0 0.0
    %967 = vmatpush2.msra.mxu0 0.0
    %968 = vmatprep.subr.mxu0 0.0
    %969 = vmatpush2.msra.mxu0 0.0
    %970 = vmatprep.subr.mxu0 0.0
    %971 = vmatpush2.msra.mxu0 0.0
    %972 = vmatprep.subr.mxu0 0.0
    %973 = vmatpush2.msra.mxu0 0.0
    %974 = vmatprep.subr.mxu0 0.0
    %975 = vmatpush2.msra.mxu0 0.0
    %976 = vmatprep.subr.mxu0 0.0
    %977 = vmatpush2.msra.mxu0 0.0
    %978 = vmatprep.mubr.f32.mxu0 0.0
    %979 = vmatmul.mubr.f32.gmra.mxu0 %v841
    %v980 = vpop.f32.mrf.mxu0
    %v981 = vadd.f32 %v836, %v980
    %v982 = vpop.f32.mrf.mxu0
    %983 = vdwg.mxu0
    %984 = vst [vmem:[#allocation16] sm:$0xff] %v910
    %985 = vst [vmem:[#allocation16 + $0x8] sm:$0xff] %v912
    %986 = vst [vmem:[#allocation16 + $0x10] sm:$0xff] %v981
    // Predicated region
    $region102: #{dpad_forward.1} parent=1 // pred_check
      _
    $region103: #{dpad_forward.1} parent=1 // pred_check_branch
      %988 = sbr.rel (0) target = $region105
    $region104: #{dpad_forward.1} parent=1 // pred_region
      %s990 = ssub.s32 384, 384
      %991 = vsyncadd [#allocation4], %s990
      %s993 = sshll.u32 [#allocation16], 4
      %s994 = int_to_ptr.vmem [resolvable:$true] %s993
      %996 = dma.vmem_to_hbm [thread:$0]  %s994, 384, %s17, [#allocation4]
    $region105: #{dpad_forward.1} parent=1 // pred_fallthru
      _
    // Predicated region
    $region106: #{dpad_forward.1} parent=1 // pred_check
      _
    $region107: #{dpad_forward.1} parent=1 // pred_check_branch
      %998 = sbr.rel (0) target = $region109
    $region108: #{dpad_forward.1} parent=1 // pred_region
      %999 = dma.done [#allocation4], 384
    $region109: #{dpad_forward.1} parent=1 // pred_fallthru
      _
    %1000 = vsyncpa [#allocation3], 1
    %1001 = vsyncpa [#allocation6], 1
    %1002 = vsyncpa [#allocation9], 1
    %1003 = vsyncpa [#allocation12], 1
    %1004 = vsyncpa [#allocation15], 1
    %1005 = vsyncpa [#allocation4], 1

</llo_original>
